<compile_context>
chip_gen: v5e
topology: v5e:2x2
jax: 0.10.0
libtpu: 0.0.40
codegen_flags: <defaults>
</compile_context>

<pallas_src>
import functools
import itertools

import jax
import jax.numpy as jnp
import numpy as np
from jax.experimental import pallas as pl
from jax.experimental.pallas import tpu as pltpu

# ---- deterministic "parameters" of the concrete point process ----
MU = 0.5       # base intensity mu()
ALPHA = 0.8    # kernel magnitude
BETA = 2.0     # kernel bandwidth

T_HORIZON = (0.0, 1.0)
S_SPACE = [(0.0, 1.0), (0.0, 1.0)]
DATA_DIM = len(S_SPACE) + 1      # 3 (time + 2 spatial marks)
INT_RES = 8                      # numerical integration resolution (small demo)

LANE = 128                       # TPU lane width
SUBLANE = 8                      # TPU sublane width (f32)


def _softplus(x):
    # numerically stable softplus (matches torch.nn.functional.softplus)
    return jnp.maximum(x, 0.0) + jnp.log(1.0 + jnp.exp(-jnp.abs(x)))


def _pick_batch_block(batch_size):
    """v7x has 2 TensorCores/chip -> keep >= 2 'parallel' grid steps; single-TC
    v5e/v6e -> fold the whole batch into one step (avoid per-step overhead)."""
    try:
        kind = jax.devices()[0].device_kind.lower()
    except Exception:  # pragma: no cover - defensive, default is safe everywhere
        kind = ""
    if ("v7" in kind) and batch_size >= 2:
        bb = max(1, batch_size // 2)
    else:
        bb = batch_size
    while batch_size % bb:       # keep the grid exact
        bb -= 1
    return bb


# -------------------------------------------------------------------------
# Fused kernel: one grid step == one block of BB batch elements.
#   tt_ref    : (T, 1)        integration time grid
#   st_ref    : (D-1, Gp)     spatial grid coords, grid points on lanes (G->Gp=128)
#   xl_ref    : (BB, D, Lp)   events feature-major, events on LANES   (L->Lp=128)
#   xs_ref    : (BB, Ls, D)   events event-major,  events on SUBLANES (L->Ls=8)
#   lams_ref  : (BB, 1, Lp)   per-event conditional intensities (lane-dense)
#   integ_ref : (BB, 1, Gp)   sum_t softplus(lambda(t, s_g)), g>=G lanes zeroed
# -------------------------------------------------------------------------
def _fused_kernel(tt_ref, st_ref, xl_ref, xs_ref, lams_ref, integ_ref, *, n_space):
    xl = xl_ref[...]                                     # (BB, D, Lp)
    xs = xs_ref[...]                                     # (BB, Ls, D)
    _, D, Lp = xl.shape
    Ls = xs.shape[1]

    # ---- per-event intensities: lam_i = softplus(sum_{j<i, t_j>0} K_ij + mu) + 1e-5
    # history j on sublanes, queries i on lanes -> K is a single (8,128) vreg.
    d2 = None
    for d in range(D):
        diff = xs[:, :, d:d + 1] - xl[:, d:d + 1, :]     # (BB, Ls, Lp)
        d2 = diff * diff if d2 is None else d2 + diff * diff
    K = ALPHA * jnp.exp(-BETA * d2)                      # (BB, Ls, Lp)
    jj = jax.lax.broadcasted_iota(jnp.int32, (Ls, Lp), 0)   # history index j
    ii = jax.lax.broadcasted_iota(jnp.int32, (Ls, Lp), 1)   # query  index i
    causal = jj < ii                                     # strictly-before history
    # NOTE: padding convention "t > 0" (a real event at t == 0 would be dropped).
    valid = xs[:, :, 0:1] > 0.0                          # (BB, Ls, 1)
    mask = jnp.logical_and(causal[None, :, :], valid)    # (BB, Ls, Lp) bool
    lam_raw = jnp.sum(jnp.where(mask, K, 0.0), axis=1, keepdims=True) + MU  # (BB,1,Lp)
    lams_ref[...] = _softplus(lam_raw) + 1e-5            # lane-dense store

    # ---- numerical integral, Gaussian kernel factored:
    #      exp(-B*(dt^2 + ds^2)) = exp(-B*dt^2) * exp(-B*ds^2)
    tt = tt_ref[...]                                     # (T, 1)
    T = tt.shape[0]
    st = st_ref[...]                                     # (D-1, Gp)
    Gp = st.shape[1]

    # time factor: history on lanes (width Ls), masked by (0 < t_j <= t)
    th = xl[:, 0:1, :Ls]                                 # (BB, 1, Ls)
    dt = tt[None, :, :] - th                             # (BB, T, Ls)
    tmask = jnp.logical_and(th <= tt[None, :, :], th > 0.0)
    wt = jnp.where(tmask, jnp.exp(-BETA * dt * dt), 0.0)  # (BB, T, Ls)

    # spatial factor: history on sublanes, grid points on lanes -> (K, N) for MXU
    ds2 = None
    for k in range(D - 1):
        diff = xs[:, :, k + 1:k + 2] - st[k:k + 1, :][None, :, :]   # (BB, Ls, Gp)
        ds2 = diff * diff if ds2 is None else ds2 + diff * diff
    es = ALPHA * jnp.exp(-BETA * ds2)                    # (BB, Ls, Gp)

    # contraction over history events: M=T, K=Ls, N=Gp (f32 accumulation kept).
    lam_grid = jnp.einsum('btl,blg->btg', wt, es,
                          preferred_element_type=jnp.float32) + MU   # (BB, T, Gp)
    lam_grid = _softplus(lam_grid)
    g_idx = jax.lax.broadcasted_iota(jnp.int32, (T, Gp), 1)
    lam_grid = jnp.where((g_idx < n_space)[None, :, :], lam_grid, 0.0)
    # reduce over the time grid in-kernel -> only (BB, 1, Gp) goes back to HBM
    integ_ref[...] = jnp.sum(lam_grid, axis=1, keepdims=True)


# -------------------------------------------------------------------------
# Wrapper: BasePointProcess.forward == log_likelihood(X) -> (lams, loglik)
# -------------------------------------------------------------------------
def point_process_forward(X, tt, s_coords, unit_vol, batch_block=None):
    B, L, D = X.shape
    G = s_coords.shape[0]
    T = tt.shape[0]
    Lp = ((L + LANE - 1) // LANE) * LANE                 # events padded to lanes
    Ls = ((L + SUBLANE - 1) // SUBLANE) * SUBLANE        # events padded to sublanes
    Gp = ((G + LANE - 1) // LANE) * LANE                 # spatial grid padded to lanes

    BB = batch_block if batch_block is not None else _pick_batch_block(B)
    n_steps = B // BB

    Xf = X.astype(jnp.float32)
    # events on lanes, feature-major (zero padding -> masked out in-kernel)
    Xl = jnp.pad(jnp.transpose(Xf, (0, 2, 1)), ((0, 0), (0, 0), (0, Lp - L)))   # (B, D, Lp)
    # events on sublanes, event-major
    Xs = jnp.pad(Xf, ((0, 0), (0, Ls - L), (0, 0)))                             # (B, Ls, D)
    St = jnp.pad(jnp.transpose(s_coords.astype(jnp.float32), (1, 0)),
                 ((0, 0), (0, Gp - G)))                                          # (D-1, Gp)
    Tt = tt.astype(jnp.float32).reshape(T, 1)                                    # (T, 1)

    flops_per_b = (3 * D * Ls * Lp + 4 * Ls * Lp
                   + 3 * (D - 1) * Ls * Gp + 2 * Ls * Gp
                   + 6 * T * Ls + 2 * T * Ls * Gp + 6 * T * Gp + 6 * Lp)
    trans_per_b = Ls * Lp + Ls * Gp + T * Ls + 2 * T * Gp + 2 * Lp
    cost = pl.CostEstimate(
        flops=int(B * flops_per_b),
        transcendentals=int(B * trans_per_b),
        bytes_accessed=int(4 * (T + (D - 1) * Gp + B * (D * Lp + Ls * D + Lp + Gp))),
    )

    kernel = functools.partial(_fused_kernel, n_space=G)

    lams_pad, integ_partial = pl.pallas_call(
        kernel,
        out_shape=(jax.ShapeDtypeStruct((B, 1, Lp), jnp.float32),
                   jax.ShapeDtypeStruct((B, 1, Gp), jnp.float32)),
        grid=(n_steps,),
        in_specs=[pl.BlockSpec((T, 1), lambda b: (0, 0)),            # tt
                  pl.BlockSpec((D - 1, Gp), lambda b: (0, 0)),       # s_coords^T
                  pl.BlockSpec((BB, D, Lp), lambda b: (b, 0, 0)),    # X (lanes)
                  pl.BlockSpec((BB, Ls, D), lambda b: (b, 0, 0))],   # X (sublanes)
        out_specs=(pl.BlockSpec((BB, 1, Lp), lambda b: (b, 0, 0)),
                   pl.BlockSpec((BB, 1, Gp), lambda b: (b, 0, 0))),
        compiler_params=pltpu.CompilerParams(dimension_semantics=("parallel",)),
        cost_estimate=cost,
    )(Tt, St, Xl, Xs)

    lams = lams_pad[:, 0, :L]                            # (B, L)  drop lane padding
    valid = X[:, :, 0] > 0.0
    sumlog = jnp.sum(jnp.where(valid, jnp.log(lams), 0.0), axis=-1)        # (B,)
    integral = jnp.sum(integ_partial[:, 0, :], axis=-1) * unit_vol         # (B,)
    loglik = sumlog - integral
    return lams, loglik


# -------------------------------------------------------------------------
# Pure-JAX reference of the same math (for correctness checking)
# -------------------------------------------------------------------------
def _reference_forward(X, tt, s_coords, unit_vol):
    B, L, D = X.shape
    sp = lambda v: jnp.logaddexp(v, 0.0)

    d2 = jnp.sum((X[:, :, None, :] - X[:, None, :, :]) ** 2, axis=-1)     # (B,L,L)
    K = ALPHA * jnp.exp(-BETA * d2)
    i_idx = jnp.arange(L)[:, None]
    j_idx = jnp.arange(L)[None, :]
    causal = (j_idx < i_idx).astype(jnp.float32)
    hist = (X[:, :, 0] > 0).astype(jnp.float32)
    lams = sp(jnp.sum(K * causal[None] * hist[:, None, :], axis=-1) + MU) + 1e-5
    sumlog = jnp.sum(jnp.log(lams) * hist, axis=-1)

    dt2 = (tt[:, None, None] - X[None, :, :, 0]) ** 2                     # (T,B,L)
    ds2 = jnp.sum((s_coords[None, :, None, :] - X[:, None, :, 1:]) ** 2, axis=-1)  # (B,G,L)
    dg2 = dt2[:, :, None, :] + ds2[None]                                  # (T,B,G,L)
    Kg = ALPHA * jnp.exp(-BETA * dg2)
    mg = ((X[None, :, :, 0] <= tt[:, None, None]) &
          (X[None, :, :, 0] > 0)).astype(jnp.float32)                     # (T,B,L)
    lam_g = sp(jnp.sum(Kg * mg[:, :, None, :], axis=-1) + MU)             # (T,B,G)
    loglik = sumlog - jnp.sum(lam_g, axis=(0, 2)) * unit_vol
    return lams, loglik


if __name__ == "__main__":
    key = jax.random.PRNGKey(0)
    B, L = 2, 8
    kt, ks = jax.random.split(key)

    # event times in (0, 1], sorted per sequence, with two padded (zero) events
    # at the end of the second sequence to exercise the masks.
    times = jnp.sort(jax.random.uniform(kt, (B, L), minval=0.05, maxval=T_HORIZON[1]), axis=1)
    pad_mask = jnp.ones((B, L), jnp.float32).at[1, L - 2:].set(0.0)
    times = times * pad_mask
    marks = jax.random.uniform(ks, (B, L, DATA_DIM - 1))
    X = jnp.concatenate([times[..., None], marks * pad_mask[..., None]],
                        axis=-1).astype(jnp.float32)                      # (2, 8, 3)

    # integration grid (same construction as the PyTorch __init__ buffers)
    tt = jnp.asarray(np.linspace(T_HORIZON[0], T_HORIZON[1], INT_RES), jnp.float32)
    ss = [np.linspace(sk[0], sk[1], INT_RES) for sk in S_SPACE]
    s_coords = jnp.asarray(np.array(list(itertools.product(*ss))), jnp.float32)  # (64, 2)
    unit_vol = float(np.prod([sk[1] - sk[0] for sk in S_SPACE] +
                             [T_HORIZON[1] - T_HORIZON[0]]) / INT_RES ** DATA_DIM)

    lams, loglik = point_process_forward(X, tt, s_coords, unit_vol)
    jax.block_until_ready((lams, loglik))

    lams_ref, loglik_ref = _reference_forward(X, tt, s_coords, unit_vol)
    np.testing.assert_allclose(np.asarray(lams), np.asarray(lams_ref), rtol=1e-4, atol=1e-5)
    np.testing.assert_allclose(np.asarray(loglik), np.asarray(loglik_ref), rtol=1e-4, atol=1e-4)

    print("KERNEL_OK")
</pallas_src>

<mosaic_0001>
module attributes {stable_mosaic.version = 11 : i64} {
  func.func @_fused_kernel(%arg0: i32, %arg1: memref<8x1xf32, #tpu.memory_space<vmem>>, %arg2: memref<2x128xf32, #tpu.memory_space<vmem>>, %arg3: memref<2x3x128xf32, #tpu.memory_space<vmem>>, %arg4: memref<2x8x3xf32, #tpu.memory_space<vmem>>, %arg5: memref<2x1x128xf32, #tpu.memory_space<vmem>>, %arg6: memref<2x1x128xf32, #tpu.memory_space<vmem>>) attributes {dimension_semantics = [#tpu.dimension_semantics<parallel>], iteration_bounds = array<i64: 1>, scalar_prefetch = 0 : i64, scratch_operands = 0 : i64, tpu.core_type = #tpu.core_type<tc>, window_params = [{pipeline_mode = #tpu.pipeline_mode<synchronous>, transform_indices = @transform_0, window_bounds = array<i64: 8, 1>}, {pipeline_mode = #tpu.pipeline_mode<synchronous>, transform_indices = @transform_1, window_bounds = array<i64: 2, 128>}, {transform_indices = @transform_2, window_bounds = array<i64: 2, 3, 128>}, {transform_indices = @transform_3, window_bounds = array<i64: 2, 8, 3>}, {transform_indices = @transform_4, window_bounds = array<i64: 2, 1, 128>}, {transform_indices = @transform_5, window_bounds = array<i64: 2, 1, 128>}]} {
    %c0 = arith.constant 0 : index
    %c0_0 = arith.constant 0 : index
    %c0_1 = arith.constant 0 : index
    %0 = vector.load %arg3[%c0, %c0_0, %c0_1] : memref<2x3x128xf32, #tpu.memory_space<vmem>>, vector<2x3x128xf32>
    %c0_2 = arith.constant 0 : index
    %c0_3 = arith.constant 0 : index
    %c0_4 = arith.constant 0 : index
    %1 = vector.load %arg4[%c0_2, %c0_3, %c0_4] : memref<2x8x3xf32, #tpu.memory_space<vmem>>, vector<2x8x3xf32>
    %2 = vector.extract_strided_slice %1 {offsets = [0, 0, 0], sizes = [2, 8, 1], strides = [1, 1, 1]} : vector<2x8x3xf32> to vector<2x8x1xf32>
    %3 = vector.extract_strided_slice %0 {offsets = [0, 0, 0], sizes = [2, 1, 128], strides = [1, 1, 1]} : vector<2x3x128xf32> to vector<2x1x128xf32>
    %4 = vector.broadcast %2 : vector<2x8x1xf32> to vector<2x8x128xf32>
    %5 = vector.broadcast %3 : vector<2x1x128xf32> to vector<2x8x128xf32>
    %6 = arith.subf %4, %5 : vector<2x8x128xf32>
    %7 = arith.mulf %6, %6 : vector<2x8x128xf32>
    %8 = vector.extract_strided_slice %1 {offsets = [0, 0, 1], sizes = [2, 8, 1], strides = [1, 1, 1]} : vector<2x8x3xf32> to vector<2x8x1xf32>
    %9 = vector.extract_strided_slice %0 {offsets = [0, 1, 0], sizes = [2, 1, 128], strides = [1, 1, 1]} : vector<2x3x128xf32> to vector<2x1x128xf32>
    %10 = vector.broadcast %8 : vector<2x8x1xf32> to vector<2x8x128xf32>
    %11 = vector.broadcast %9 : vector<2x1x128xf32> to vector<2x8x128xf32>
    %12 = arith.subf %10, %11 : vector<2x8x128xf32>
    %13 = arith.mulf %12, %12 : vector<2x8x128xf32>
    %14 = arith.addf %7, %13 : vector<2x8x128xf32>
    %15 = vector.extract_strided_slice %1 {offsets = [0, 0, 2], sizes = [2, 8, 1], strides = [1, 1, 1]} : vector<2x8x3xf32> to vector<2x8x1xf32>
    %16 = vector.extract_strided_slice %0 {offsets = [0, 2, 0], sizes = [2, 1, 128], strides = [1, 1, 1]} : vector<2x3x128xf32> to vector<2x1x128xf32>
    %17 = vector.broadcast %15 : vector<2x8x1xf32> to vector<2x8x128xf32>
    %18 = vector.broadcast %16 : vector<2x1x128xf32> to vector<2x8x128xf32>
    %19 = arith.subf %17, %18 : vector<2x8x128xf32>
    %20 = arith.mulf %19, %19 : vector<2x8x128xf32>
    %21 = arith.addf %14, %20 : vector<2x8x128xf32>
    %cst = arith.constant -2.000000e+00 : f32
    %22 = vector.broadcast %cst : f32 to vector<2x8x128xf32>
    %23 = arith.mulf %22, %21 : vector<2x8x128xf32>
    %24 = math.exp %23 : vector<2x8x128xf32>
    %cst_5 = arith.constant 8.000000e-01 : f32
    %25 = vector.broadcast %cst_5 : f32 to vector<2x8x128xf32>
    %26 = arith.mulf %25, %24 : vector<2x8x128xf32>
    %27 = tpu.iota {dimensions = array<i32: 0>} : vector<8x128xi32>
    %28 = tpu.iota {dimensions = array<i32: 1>} : vector<8x128xi32>
    %29 = arith.cmpi slt, %27, %28 : vector<8x128xi32>
    %30 = vector.extract_strided_slice %1 {offsets = [0, 0, 0], sizes = [2, 8, 1], strides = [1, 1, 1]} : vector<2x8x3xf32> to vector<2x8x1xf32>
    %cst_6 = arith.constant 0.000000e+00 : f32
    %31 = vector.broadcast %cst_6 : f32 to vector<2x8x1xf32>
    %32 = arith.cmpf ogt, %30, %31 : vector<2x8x1xf32>
    %33 = vector.shape_cast %29 : vector<8x128xi1> to vector<1x8x128xi1>
    %34 = vector.broadcast %33 : vector<1x8x128xi1> to vector<2x8x128xi1>
    %35 = vector.broadcast %32 : vector<2x8x1xi1> to vector<2x8x128xi1>
    %36 = arith.andi %34, %35 : vector<2x8x128xi1>
    %cst_7 = arith.constant 0.000000e+00 : f32
    %37 = vector.broadcast %cst_7 : f32 to vector<2x8x128xf32>
    %38 = arith.select %36, %26, %37 : vector<2x8x128xi1>, vector<2x8x128xf32>
    %cst_8 = arith.constant dense<0.000000e+00> : vector<2x128xf32>
    %39 = vector.multi_reduction <add>, %38, %cst_8 [1] : vector<2x8x128xf32> to vector<2x128xf32>
    %40 = vector.shape_cast %39 : vector<2x128xf32> to vector<2x1x128xf32>
    %cst_9 = arith.constant 5.000000e-01 : f32
    %41 = vector.broadcast %cst_9 : f32 to vector<2x1x128xf32>
    %42 = arith.addf %40, %41 : vector<2x1x128xf32>
    %cst_10 = arith.constant 0.000000e+00 : f32
    %43 = vector.broadcast %cst_10 : f32 to vector<2x1x128xf32>
    %44 = arith.maximumf %42, %43 : vector<2x1x128xf32>
    %45 = math.absf %42 : vector<2x1x128xf32>
    %cst_11 = arith.constant 0.000000e+00 : f32
    %46 = vector.broadcast %cst_11 : f32 to vector<2x1x128xf32>
    %47 = arith.subf %46, %45 : vector<2x1x128xf32>
    %48 = math.exp %47 : vector<2x1x128xf32>
    %cst_12 = arith.constant 1.000000e+00 : f32
    %49 = vector.broadcast %cst_12 : f32 to vector<2x1x128xf32>
    %50 = arith.addf %49, %48 : vector<2x1x128xf32>
    %51 = math.log %50 : vector<2x1x128xf32>
    %52 = arith.addf %44, %51 : vector<2x1x128xf32>
    %cst_13 = arith.constant 9.99999974E-6 : f32
    %53 = vector.broadcast %cst_13 : f32 to vector<2x1x128xf32>
    %54 = arith.addf %52, %53 : vector<2x1x128xf32>
    %c0_14 = arith.constant 0 : index
    %c0_15 = arith.constant 0 : index
    %c0_16 = arith.constant 0 : index
    %55 = vector.load %arg5[%c0_14, %c0_15, %c0_16] : memref<2x1x128xf32, #tpu.memory_space<vmem>>, vector<2x1x128xf32>
    tpu.vector_store %arg5[%c0_14, %c0_15, %c0_16], %54 {strides = array<i32>} : memref<2x1x128xf32, #tpu.memory_space<vmem>>, vector<2x1x128xf32>,
    %c0_17 = arith.constant 0 : index
    %c0_18 = arith.constant 0 : index
    %56 = vector.load %arg1[%c0_17, %c0_18] : memref<8x1xf32, #tpu.memory_space<vmem>>, vector<8x1xf32>
    %c0_19 = arith.constant 0 : index
    %c0_20 = arith.constant 0 : index
    %57 = vector.load %arg2[%c0_19, %c0_20] : memref<2x128xf32, #tpu.memory_space<vmem>>, vector<2x128xf32>
    %58 = vector.extract_strided_slice %0 {offsets = [0, 0, 0], sizes = [2, 1, 8], strides = [1, 1, 1]} : vector<2x3x128xf32> to vector<2x1x8xf32>
    %59 = vector.shape_cast %56 : vector<8x1xf32> to vector<1x8x1xf32>
    %60 = vector.broadcast %59 : vector<1x8x1xf32> to vector<2x8x8xf32>
    %61 = vector.broadcast %58 : vector<2x1x8xf32> to vector<2x8x8xf32>
    %62 = arith.subf %60, %61 : vector<2x8x8xf32>
    %63 = vector.shape_cast %56 : vector<8x1xf32> to vector<1x8x1xf32>
    %64 = vector.broadcast %58 : vector<2x1x8xf32> to vector<2x8x8xf32>
    %65 = vector.broadcast %63 : vector<1x8x1xf32> to vector<2x8x8xf32>
    %66 = arith.cmpf ole, %64, %65 : vector<2x8x8xf32>
    %cst_21 = arith.constant 0.000000e+00 : f32
    %67 = vector.broadcast %cst_21 : f32 to vector<2x1x8xf32>
    %68 = arith.cmpf ogt, %58, %67 : vector<2x1x8xf32>
    %69 = vector.broadcast %68 : vector<2x1x8xi1> to vector<2x8x8xi1>
    %70 = arith.andi %66, %69 : vector<2x8x8xi1>
    %cst_22 = arith.constant -2.000000e+00 : f32
    %71 = vector.broadcast %cst_22 : f32 to vector<2x8x8xf32>
    %72 = arith.mulf %71, %62 : vector<2x8x8xf32>
    %73 = arith.mulf %72, %62 : vector<2x8x8xf32>
    %74 = math.exp %73 : vector<2x8x8xf32>
    %cst_23 = arith.constant 0.000000e+00 : f32
    %75 = vector.broadcast %cst_23 : f32 to vector<2x8x8xf32>
    %76 = arith.select %70, %74, %75 : vector<2x8x8xi1>, vector<2x8x8xf32>
    %77 = vector.extract_strided_slice %1 {offsets = [0, 0, 1], sizes = [2, 8, 1], strides = [1, 1, 1]} : vector<2x8x3xf32> to vector<2x8x1xf32>
    %78 = vector.extract_strided_slice %57 {offsets = [0, 0], sizes = [1, 128], strides = [1, 1]} : vector<2x128xf32> to vector<1x128xf32>
    %79 = vector.shape_cast %78 : vector<1x128xf32> to vector<1x1x128xf32>
    %80 = vector.broadcast %77 : vector<2x8x1xf32> to vector<2x8x128xf32>
    %81 = vector.broadcast %79 : vector<1x1x128xf32> to vector<2x8x128xf32>
    %82 = arith.subf %80, %81 : vector<2x8x128xf32>
    %83 = arith.mulf %82, %82 : vector<2x8x128xf32>
    %84 = vector.extract_strided_slice %1 {offsets = [0, 0, 2], sizes = [2, 8, 1], strides = [1, 1, 1]} : vector<2x8x3xf32> to vector<2x8x1xf32>
    %85 = vector.extract_strided_slice %57 {offsets = [1, 0], sizes = [1, 128], strides = [1, 1]} : vector<2x128xf32> to vector<1x128xf32>
    %86 = vector.shape_cast %85 : vector<1x128xf32> to vector<1x1x128xf32>
    %87 = vector.broadcast %84 : vector<2x8x1xf32> to vector<2x8x128xf32>
    %88 = vector.broadcast %86 : vector<1x1x128xf32> to vector<2x8x128xf32>
    %89 = arith.subf %87, %88 : vector<2x8x128xf32>
    %90 = arith.mulf %89, %89 : vector<2x8x128xf32>
    %91 = arith.addf %83, %90 : vector<2x8x128xf32>
    %cst_24 = arith.constant -2.000000e+00 : f32
    %92 = vector.broadcast %cst_24 : f32 to vector<2x8x128xf32>
    %93 = arith.mulf %92, %91 : vector<2x8x128xf32>
    %94 = math.exp %93 : vector<2x8x128xf32>
    %cst_25 = arith.constant 8.000000e-01 : f32
    %95 = vector.broadcast %cst_25 : f32 to vector<2x8x128xf32>
    %96 = arith.mulf %95, %94 : vector<2x8x128xf32>
    "tpu.trace_start"() <{level = 10 : i32, message = "btl,blg->btg"}> : () -> ()
    %cst_26 = arith.constant dense<0.000000e+00> : vector<2x8x128xf32>
    %97 = tpu.matmul %76, %96, %cst_26 {dimension_numbers = #tpu.dot_dimension_numbers<[2], [1], [1], [2], [0, 0, 0, 1, 1, 2], [0], [0]>} : vector<2x8x8xf32>, vector<2x8x128xf32>, vector<2x8x128xf32> -> vector<2x8x128xf32>
    "tpu.trace_stop"() : () -> ()
    %cst_27 = arith.constant 5.000000e-01 : f32
    %98 = vector.broadcast %cst_27 : f32 to vector<2x8x128xf32>
    %99 = arith.addf %97, %98 : vector<2x8x128xf32>
    %cst_28 = arith.constant 0.000000e+00 : f32
    %100 = vector.broadcast %cst_28 : f32 to vector<2x8x128xf32>
    %101 = arith.maximumf %99, %100 : vector<2x8x128xf32>
    %102 = math.absf %99 : vector<2x8x128xf32>
    %cst_29 = arith.constant 0.000000e+00 : f32
    %103 = vector.broadcast %cst_29 : f32 to vector<2x8x128xf32>
    %104 = arith.subf %103, %102 : vector<2x8x128xf32>
    %105 = math.exp %104 : vector<2x8x128xf32>
    %cst_30 = arith.constant 1.000000e+00 : f32
    %106 = vector.broadcast %cst_30 : f32 to vector<2x8x128xf32>
    %107 = arith.addf %106, %105 : vector<2x8x128xf32>
    %108 = math.log %107 : vector<2x8x128xf32>
    %109 = arith.addf %101, %108 : vector<2x8x128xf32>
    %110 = tpu.iota {dimensions = array<i32: 1>} : vector<8x128xi32>
    %c64_i32 = arith.constant 64 : i32
    %111 = vector.broadcast %c64_i32 : i32 to vector<8x128xi32>
    %112 = arith.cmpi slt, %110, %111 : vector<8x128xi32>
    %113 = vector.shape_cast %112 : vector<8x128xi1> to vector<1x8x128xi1>
    %cst_31 = arith.constant 0.000000e+00 : f32
    %114 = vector.shape_cast %113 : vector<1x8x128xi1> to vector<1x8x128xi1>
    %115 = vector.broadcast %114 : vector<1x8x128xi1> to vector<2x8x128xi1>
    %116 = vector.broadcast %cst_31 : f32 to vector<2x8x128xf32>
    %117 = arith.select %115, %109, %116 : vector<2x8x128xi1>, vector<2x8x128xf32>
    %cst_32 = arith.constant dense<0.000000e+00> : vector<2x128xf32>
    %118 = vector.multi_reduction <add>, %117, %cst_32 [1] : vector<2x8x128xf32> to vector<2x128xf32>
    %119 = vector.shape_cast %118 : vector<2x128xf32> to vector<2x1x128xf32>
    %c0_33 = arith.constant 0 : index
    %c0_34 = arith.constant 0 : index
    %c0_35 = arith.constant 0 : index
    %120 = vector.load %arg6[%c0_33, %c0_34, %c0_35] : memref<2x1x128xf32, #tpu.memory_space<vmem>>, vector<2x1x128xf32>
    tpu.vector_store %arg6[%c0_33, %c0_34, %c0_35], %119 {strides = array<i32>} : memref<2x1x128xf32, #tpu.memory_space<vmem>>, vector<2x1x128xf32>,
    return
  }
  func.func @transform_0(%arg0: i32) -> (i32, i32) {
    %c0_i32 = arith.constant 0 : i32
    %c0_i32_0 = arith.constant 0 : i32
    %c0_i32_1 = arith.constant 0 : i32
    return %c0_i32, %c0_i32_0 : i32, i32
  }
  func.func @transform_1(%arg0: i32) -> (i32, i32) {
    %c0_i32 = arith.constant 0 : i32
    %c0_i32_0 = arith.constant 0 : i32
    %c0_i32_1 = arith.constant 0 : i32
    return %c0_i32, %c0_i32_0 : i32, i32
  }
  func.func @transform_2(%arg0: i32) -> (i32, i32, i32) {
    %c0_i32 = arith.constant 0 : i32
    %c0_i32_0 = arith.constant 0 : i32
    %c0_i32_1 = arith.constant 0 : i32
    return %arg0, %c0_i32, %c0_i32_0 : i32, i32, i32
  }
  func.func @transform_3(%arg0: i32) -> (i32, i32, i32) {
    %c0_i32 = arith.constant 0 : i32
    %c0_i32_0 = arith.constant 0 : i32
    %c0_i32_1 = arith.constant 0 : i32
    return %arg0, %c0_i32, %c0_i32_0 : i32, i32, i32
  }
  func.func @transform_4(%arg0: i32) -> (i32, i32, i32) {
    %c0_i32 = arith.constant 0 : i32
    %c0_i32_0 = arith.constant 0 : i32
    %c0_i32_1 = arith.constant 0 : i32
    return %arg0, %c0_i32, %c0_i32_0 : i32, i32, i32
  }
  func.func @transform_5(%arg0: i32) -> (i32, i32, i32) {
    %c0_i32 = arith.constant 0 : i32
    %c0_i32_0 = arith.constant 0 : i32
    %c0_i32_1 = arith.constant 0 : i32
    return %arg0, %c0_i32, %c0_i32_0 : i32, i32, i32
  }
}

</mosaic_0001>

<llo_original>
// kernel: tpu_custom_call.1
$region0: #{tpu_custom_call.1}
  #allocation0 [shape = 'u32[]', space=smem, size = 0x4, offset = 0x4, fixed_abs, tag = 'smem constant byte address 0x4 - core index']
  #allocation1 [shape = 'u32[72,128]{1,0:T(1,128)}', space=vmem, size = 0x9000, scoped, tag = 'internal scratch']
  %s0 = inlined_call_operand.vmem [shape: f32[8,1], index: 0, kind: input, shape index: {}]
  %s1 = inlined_call_operand.vmem [shape: f32[2,128], index: 1, kind: input, shape index: {}]
  %s2 = inlined_call_operand.vmem [shape: f32[2,3,128], index: 2, kind: input, shape index: {}]
  %s3 = inlined_call_operand.vmem [shape: f32[2,8,3], index: 3, kind: input, shape index: {}]
  %s4 = inlined_call_operand.hbm [shape: f32[2,1,128], index: 4, kind: output, shape index: {0}]
  %s5 = inlined_call_operand.hbm [shape: f32[2,1,128], index: 5, kind: output, shape index: {1}]
  %6 = xla_tuple %s4, %s5
  %s7 = sld [smem:[#allocation0]]
  $region34: #{tpu_custom_call.1} parent=0
    _
  %s9 = ssub.s32 1, %s7
  %s10 = scalar_select 0, %s9, %s7
  $region1: #{tpu_custom_call.1} parent=0
    #allocation2 [shape = 'u8[1024]{0}', space=vmem, size = 0x400, scoped, tag = 'output window, operand 0, single buffered']
    #allocation3 [shape = 's32[1]{0}', space=sflag, size = 0x4, scoped, tag = 'scoped memory for tpu_custom_call.1']
    #allocation4 [shape = 'u8[1024]{0}', space=vmem, size = 0x400, scoped, tag = 'output window, operand 1, single buffered']
    #allocation5 [shape = 's32[1]{0}', space=sflag, size = 0x4, scoped, tag = 'scoped memory for tpu_custom_call.1']
    %11 = vsyncpa [#allocation3], 0
    %12 = vsyncpa [#allocation5], 0
    // Predicated region
    $region2: #{tpu_custom_call.1} parent=1 // pred_check
      _
    $region3: #{tpu_custom_call.1} parent=1 // pred_check_branch
      %14 = sbr.rel (0) target = $region5
    $region4: #{tpu_custom_call.1} parent=1 // pred_region
      _
    $region5: #{tpu_custom_call.1} parent=1 // pred_fallthru
      _
    // Predicated region
    $region6: #{tpu_custom_call.1} parent=1 // pred_check
      _
    $region7: #{tpu_custom_call.1} parent=1 // pred_check_branch
      %16 = sbr.rel (0) target = $region9
    $region8: #{tpu_custom_call.1} parent=1 // pred_region
      _
    $region9: #{tpu_custom_call.1} parent=1 // pred_fallthru
      _
    // Predicated region
    $region10: #{tpu_custom_call.1} parent=1 // pred_check
      _
    $region11: #{tpu_custom_call.1} parent=1 // pred_check_branch
      %18 = sbr.rel (0) target = $region13
    $region12: #{tpu_custom_call.1} parent=1 // pred_region
      _
    $region13: #{tpu_custom_call.1} parent=1 // pred_fallthru
      _
    // Predicated region
    $region14: #{tpu_custom_call.1} parent=1 // pred_check
      _
    $region15: #{tpu_custom_call.1} parent=1 // pred_check_branch
      %20 = sbr.rel (0) target = $region17
    $region16: #{tpu_custom_call.1} parent=1 // pred_region
      _
    $region17: #{tpu_custom_call.1} parent=1 // pred_fallthru
      _
    %v21 = vld [vmem:[%s2] sm:$0x7]
    %v22 = vld [vmem:[%s2 + $0x4] sm:$0x7]
    %v23 = vld [vmem:[%s3] sm:$0xff]
    %v24 = vld [vmem:[%s3 + $0x8] sm:$0xff]
    %26 = vset.pattern.permute.xlu0 0
    %27 = vperm.xlu0 %26, %v23
    %v28 = vpop.permute.xlu0 %27
    %31 = vset.pattern.permute.xlu0 0
    %32 = vperm.xlu0 %31, %v24
    %v33 = vpop.permute.xlu0 %32
    %v35 = vperm.slane %v21, 0
    %v36 = vperm.slane %v22, 0
    %v37 = vsub.f32 %v28, %v35
    %v38 = vsub.f32 %v33, %v36
    %v39 = vmul.f32 %v37, %v37
    %v40 = vmul.f32 %v38, %v38
    %41 = vset.pattern.permute.xlu0 1
    %42 = vperm.xlu0 %41, %v23
    %v43 = vpop.permute.xlu0 %42
    %45 = vset.pattern.permute.xlu0 1
    %46 = vperm.xlu0 %45, %v24
    %v47 = vpop.permute.xlu0 %46
    %v49 = vperm.slane %v21, 1
    %v50 = vperm.slane %v22, 1
    %v51 = vsub.f32 %v43, %v49
    %v52 = vsub.f32 %v47, %v50
    %v53 = vmul.f32 %v51, %v51
    %v54 = vmul.f32 %v52, %v52
    %v55 = vadd.f32 %v39, %v53
    %v56 = vadd.f32 %v40, %v54
    %57 = vset.pattern.permute.xlu0 2
    %58 = vperm.xlu0 %57, %v23
    %v59 = vpop.permute.xlu0 %58
    %61 = vset.pattern.permute.xlu0 2
    %62 = vperm.xlu0 %61, %v24
    %v63 = vpop.permute.xlu0 %62
    %v65 = vperm.slane %v21, 2
    %v66 = vperm.slane %v22, 2
    %v67 = vsub.f32 %v59, %v65
    %v68 = vsub.f32 %v63, %v66
    %v69 = vmul.f32 %v67, %v67
    %v70 = vmul.f32 %v68, %v68
    %v71 = vadd.f32 %v55, %v69
    %v72 = vadd.f32 %v56, %v70
    %v73 = vmul.f32 %v71, -2.0
    %v74 = vmul.f32 %v72, -2.0
    %v75 = vmul.f32 %v73, 1.442695
    %v76 = vpow.pop %v75
    %v77 = vmul.f32 %v74, 1.442695
    %v78 = vpow.pop %v77
    %v79 = vmul.f32 %v76, 0.8
    %v80 = vmul.f32 %v78, 0.8
    %v81 = vlaneseq
    %v82 = vshrl.u32 %v81, 7
    %v83 = vlaneseq
    %v84 = vand.u32 %v83, 127
    %vm85 = vcmp.lt.s32.totalorder %v82, %v84
    %vm86 = vcmp.gt.f32.partialorder %v23, 0.0
    %vm87 = vcmp.gt.f32.partialorder %v24, 0.0
    %v88 = vsel %vm85, 1, 0
    %vm89 = vcmp.eq.s32.totalorder %v88, 1
    %v90 = vsel %vm86, 1, 0
    %v91 = vsel %vm87, 1, 0
    %92 = vset.pattern.permute.xlu0 0
    %93 = vperm.xlu0 %92, %v90
    %v94 = vpop.permute.xlu0 %93
    %95 = vset.pattern.permute.xlu0 0
    %96 = vperm.xlu0 %95, %v91
    %v97 = vpop.permute.xlu0 %96
    %vm98 = vcmp.eq.s32.totalorder %v94, 1
    %vm99 = vcmp.eq.s32.totalorder %v97, 1
    %vm100 = vmand %vm89, %vm98
    %vm101 = vmand %vm89, %vm99
    %v102 = vsel %vm100, %v79, 0.0
    %v103 = vsel %vm101, %v80, 0.0
    %v104 = vrot.slane %v102, 4
    %v105 = vadd.f32 %v102, %v104
    %v106 = vrot.slane %v105, 2
    %v107 = vadd.f32 %v105, %v106
    %v108 = vrot.slane %v107, 1
    %v109 = vadd.f32 %v107, %v108
    %v110 = vrot.slane %v103, 4
    %v111 = vadd.f32 %v103, %v110
    %v112 = vrot.slane %v111, 2
    %v113 = vadd.f32 %v111, %v112
    %v114 = vrot.slane %v113, 1
    %v115 = vadd.f32 %v113, %v114
    %v116 = vadd.f32 %v109, 0.5
    %v117 = vadd.f32 %v115, 0.5
    %v118 = vmax.f32 %v116, 0.0
    %v119 = vmax.f32 %v117, 0.0
    %v120 = vand.u32 2147483647, %v116
    %v121 = vand.u32 2147483647, %v117
    %v122 = vsub.f32 0.0, %v120
    %v123 = vsub.f32 0.0, %v121
    %v124 = vmul.f32 %v122, 1.442695
    %v125 = vpow.pop %v124
    %v126 = vmul.f32 %v123, 1.442695
    %v127 = vpow.pop %v126
    %v128 = vadd.f32 %v125, 1.0
    %v129 = vadd.f32 %v127, 1.0
    %v130 = vlog2.pop %v128
    %v131 = vmul.f32 %v130, 0.6931472
    %v132 = vlog2.pop %v129
    %v133 = vmul.f32 %v132, 0.6931472
    %v134 = vadd.f32 %v118, %v131
    %v135 = vadd.f32 %v119, %v133
    %v136 = vadd.f32 %v134, 1e-05
    %v137 = vadd.f32 %v135, 1e-05
    %138 = vst [vmem:[#allocation2] sm:$0x1] %v136
    %139 = vst [vmem:[#allocation2 + $0x1] sm:$0x1] %v137
    %v140 = vld [vmem:[%s0] sm:$0xff]
    %v141 = vld [vmem:[%s1] sm:$0x3]
    %143 = vset.pattern.permute.xlu0 0
    %144 = vperm.xlu0 %143, %v140
    %v145 = vpop.permute.xlu0 %144
    %v147 = vsub.f32 %v145, %v35
    %v148 = vsub.f32 %v145, %v36
    %vm149 = vcmp.le.f32.partialorder %v35, %v145
    %vm150 = vcmp.le.f32.partialorder %v36, %v145
    %vm151 = vcmp.gt.f32.partialorder %v21, 0.0
    %vm152 = vcmp.gt.f32.partialorder %v22, 0.0
    %v153 = vsel %vm151, 1, 0
    %v154 = vsel %vm152, 1, 0
    %v155 = vperm.slane %v153, 0
    %v156 = vperm.slane %v154, 0
    %vm157 = vcmp.eq.s32.totalorder %v155, 1
    %vm158 = vcmp.eq.s32.totalorder %v156, 1
    %vm159 = vmand %vm149, %vm157
    %vm160 = vmand %vm150, %vm158
    %v161 = vmul.f32 %v147, -2.0
    %v162 = vmul.f32 %v148, -2.0
    %v163 = vmul.f32 %v161, %v147
    %v164 = vmul.f32 %v162, %v148
    %v165 = vmul.f32 %v163, 1.442695
    %v166 = vpow.pop %v165
    %v167 = vmul.f32 %v164, 1.442695
    %v168 = vpow.pop %v167
    %v169 = vsel %vm159, %v166, 0.0
    %v170 = vsel %vm160, %v168, 0.0
    %v171 = vperm.slane %v141, 0
    %v172 = vsub.f32 %v43, %v171
    %v173 = vsub.f32 %v47, %v171
    %v174 = vmul.f32 %v172, %v172
    %v175 = vmul.f32 %v173, %v173
    %v176 = vperm.slane %v141, 1
    %v177 = vsub.f32 %v59, %v176
    %v178 = vsub.f32 %v63, %v176
    %v179 = vmul.f32 %v177, %v177
    %v180 = vmul.f32 %v178, %v178
    %v181 = vadd.f32 %v174, %v179
    %v182 = vadd.f32 %v175, %v180
    %v183 = vmul.f32 %v181, -2.0
    %v184 = vmul.f32 %v182, -2.0
    %v185 = vmul.f32 %v183, 1.442695
    %v186 = vpow.pop %v185
    %v187 = vmul.f32 %v184, 1.442695
    %v188 = vpow.pop %v187
    %v189 = vmul.f32 %v186, 0.8
    %v190 = vmul.f32 %v188, 0.8
    %vm191 = vcmask 64512
    %v193 = vsel %vm191, %v169, 0
    %195 = vmatpush.msra.mxu0 0.0
    %196 = vmatpush.msra.mxu0 0.0
    %197 = vmatpush.msra.mxu0 0.0
    %198 = vmatpush.msra.mxu0 0.0
    %199 = vmatpush.msra.mxu0 0.0
    %200 = vmatpush.msra.mxu0 0.0
    %201 = vmatpush.msra.mxu0 0.0
    %202 = vmatpush.msra.mxu0 0.0
    %203 = vmatpush.msra.mxu0 0.0
    %204 = vmatpush.msra.mxu0 0.0
    %205 = vmatpush.msra.mxu0 0.0
    %206 = vmatpush.msra.mxu0 0.0
    %207 = vmatpush.msra.mxu0 0.0
    %208 = vmatpush.msra.mxu0 0.0
    %209 = vmatpush.msra.mxu0 0.0
    %210 = vmatpush.msra.mxu0 %v189
    %211 = vmatmul.f32.gmra.mxu0 %v193
    %v212 = vpop.f32.mrf.mxu0
    %v213 = vadd.f32 0.5, %v212
    %214 = vdwg.mxu0
    %v216 = vsel %vm191, %v170, 0
    %218 = vmatpush.msra.mxu0 0.0
    %219 = vmatpush.msra.mxu0 0.0
    %220 = vmatpush.msra.mxu0 0.0
    %221 = vmatpush.msra.mxu0 0.0
    %222 = vmatpush.msra.mxu0 0.0
    %223 = vmatpush.msra.mxu0 0.0
    %224 = vmatpush.msra.mxu0 0.0
    %225 = vmatpush.msra.mxu0 0.0
    %226 = vmatpush.msra.mxu0 0.0
    %227 = vmatpush.msra.mxu0 0.0
    %228 = vmatpush.msra.mxu0 0.0
    %229 = vmatpush.msra.mxu0 0.0
    %230 = vmatpush.msra.mxu0 0.0
    %231 = vmatpush.msra.mxu0 0.0
    %232 = vmatpush.msra.mxu0 0.0
    %233 = vmatpush.msra.mxu0 %v190
    %234 = vmatmul.f32.gmra.mxu0 %v216
    %v235 = vpop.f32.mrf.mxu0
    %v236 = vadd.f32 0.5, %v235
    %237 = vdwg.mxu0
    %v238 = vmax.f32 %v213, 0.0
    %v239 = vmax.f32 %v236, 0.0
    %v240 = vand.u32 2147483647, %v213
    %v241 = vand.u32 2147483647, %v236
    %v242 = vsub.f32 0.0, %v240
    %v243 = vsub.f32 0.0, %v241
    %v244 = vmul.f32 %v242, 1.442695
    %v245 = vpow.pop %v244
    %v246 = vmul.f32 %v243, 1.442695
    %v247 = vpow.pop %v246
    %v248 = vadd.f32 %v245, 1.0
    %v249 = vadd.f32 %v247, 1.0
    %v250 = vlog2.pop %v248
    %v251 = vmul.f32 %v250, 0.6931472
    %v252 = vlog2.pop %v249
    %v253 = vmul.f32 %v252, 0.6931472
    %v254 = vadd.f32 %v238, %v251
    %v255 = vadd.f32 %v239, %v253
    %vm256 = vcmp.lt.s32.totalorder %v84, 64
    %v257 = vsel %vm256, 1, 0
    %vm258 = vcmp.eq.s32.totalorder %v257, 1
    %v259 = vsel %vm258, %v254, 0.0
    %v260 = vsel %vm258, %v255, 0.0
    %v261 = vrot.slane %v259, 4
    %v262 = vadd.f32 %v259, %v261
    %v263 = vrot.slane %v262, 2
    %v264 = vadd.f32 %v262, %v263
    %v265 = vrot.slane %v264, 1
    %v266 = vadd.f32 %v264, %v265
    %v267 = vrot.slane %v260, 4
    %v268 = vadd.f32 %v260, %v267
    %v269 = vrot.slane %v268, 2
    %v270 = vadd.f32 %v268, %v269
    %v271 = vrot.slane %v270, 1
    %v272 = vadd.f32 %v270, %v271
    %273 = vst [vmem:[#allocation4] sm:$0x1] %v266
    %274 = vst [vmem:[#allocation4 + $0x1] sm:$0x1] %v272
    // Predicated region
    $region18: #{tpu_custom_call.1} parent=1 // pred_check
      _
    $region19: #{tpu_custom_call.1} parent=1 // pred_check_branch
      %276 = sbr.rel (0) target = $region21
    $region20: #{tpu_custom_call.1} parent=1 // pred_region
      %278 = vsyncadd [#allocation3], 0
      %s279 = sshll.u32 [#allocation2], 4
      %s280 = int_to_ptr.vmem [resolvable:$true] %s279
      %s281 = sshll.u32 %s4, 4
      %s282 = int_to_ptr.hbm [resolvable:$true] %s281
      %287 = dma.vmem_to_hbm [thread:$0]  %s280, 32, %s282, [#allocation3], 16, 16, 1
    $region21: #{tpu_custom_call.1} parent=1 // pred_fallthru
      _
    // Predicated region
    $region22: #{tpu_custom_call.1} parent=1 // pred_check
      _
    $region23: #{tpu_custom_call.1} parent=1 // pred_check_branch
      %289 = sbr.rel (0) target = $region25
    $region24: #{tpu_custom_call.1} parent=1 // pred_region
      %291 = vsyncadd [#allocation5], 0
      %s292 = sshll.u32 [#allocation4], 4
      %s293 = int_to_ptr.vmem [resolvable:$true] %s292
      %s294 = sshll.u32 %s5, 4
      %s295 = int_to_ptr.hbm [resolvable:$true] %s294
      %300 = dma.vmem_to_hbm [thread:$0]  %s293, 32, %s295, [#allocation5], 16, 16, 1
    $region25: #{tpu_custom_call.1} parent=1 // pred_fallthru
      _
    // Predicated region
    $region26: #{tpu_custom_call.1} parent=1 // pred_check
      _
    $region27: #{tpu_custom_call.1} parent=1 // pred_check_branch
      %302 = sbr.rel (0) target = $region29
    $region28: #{tpu_custom_call.1} parent=1 // pred_region
      %304 = dma.done [#allocation3], 32
    $region29: #{tpu_custom_call.1} parent=1 // pred_fallthru
      _
    // Predicated region
    $region30: #{tpu_custom_call.1} parent=1 // pred_check
      _
    $region31: #{tpu_custom_call.1} parent=1 // pred_check_branch
      %306 = sbr.rel (0) target = $region33
    $region32: #{tpu_custom_call.1} parent=1 // pred_region
      %308 = dma.done [#allocation5], 32
    $region33: #{tpu_custom_call.1} parent=1 // pred_fallthru
      _
    %309 = vsyncpa [#allocation3], 1
    %310 = vsyncpa [#allocation5], 1

</llo_original>
